<compile_context>
chip_gen: v7x
topology: tpu7x:2x2x1
jax: 0.10.0
libtpu: 0.0.40
codegen_flags: <defaults>
</compile_context>

<pallas_src>
import jax
import jax.numpy as jnp
import numpy as np
from jax.experimental import pallas as pl
from jax.experimental.pallas import tpu as pltpu


def _round_up(v, m):
    return (v + m - 1) // m * m


def make_cnn_forward(*, num_features, filters, kernel_size, pool_size,
                     seq_length_input, hidden_units, seq_length_output,
                     batch_tile=256):
    F = num_features
    K = kernel_size
    H = hidden_units
    L_in = seq_length_input
    L_conv = L_in - (K - 1)                                    # Conv1d 'valid'
    L_pool = (L_conv - (pool_size - 1) - 1) // pool_size + 1   # MaxPool1d (floor)
    L_used = L_pool * pool_size                                # conv cols the pool consumes
    flat_dim = filters * L_pool
    FP = _round_up(flat_dim, 8)                  # sublane-aligned pooled row count
    OUT_ROWS = _round_up(seq_length_output, 8)   # sublane-aligned output rows
    LF = L_in * F
    batch_tile = _round_up(batch_tile, 128)

    def prepare_params(params):
        """One-time weight preprocessing (hoisted out of the per-call path)."""
        wc = params["conv_w"].astype(jnp.float32)    # (filters, F, K)
        bc = params["conv_b"].astype(jnp.float32)    # (filters,)
        wh = params["hid_w"].astype(jnp.float32)     # (H, filters*L_pool)
        bh = params["hid_b"].astype(jnp.float32)     # (H,)
        wo = params["out_w"].astype(jnp.float32)     # (seq_out, H)
        bo = params["out_b"].astype(jnp.float32)     # (seq_out,)

        # Banded conv weight.  Row (j*FP + c*L_pool + p) holds the Conv1d taps of
        # filter c for conv position l = p*pool_size + j laid against one sample's
        # flat (L_in*F) row, so  conv_all = Wb @ x_sample  is the full Conv1d for
        # every (filter, position) the MaxPool consumes, already grouped so that
        # pooling is max over the pool_size row-slabs of size FP.
        wc_kf = jnp.transpose(wc, (0, 2, 1))                       # (filters, K, F)
        w5 = jnp.zeros((filters, L_used, L_in, F), jnp.float32)
        for l in range(L_used):
            w5 = w5.at[:, l, l:l + K, :].set(wc_kf)
        w5 = w5.reshape(filters, L_pool, pool_size, LF)
        w5 = jnp.transpose(w5, (2, 0, 1, 3)).reshape(pool_size, flat_dim, LF)
        w5 = jnp.pad(w5, ((0, 0), (0, FP - flat_dim), (0, 0)))
        wconv = w5.reshape(pool_size * FP, LF)

        # Conv bias repeated per pooled position (row order c*L_pool + p, zero pad).
        bcr = jnp.pad(jnp.repeat(bc, L_pool), (0, FP - flat_dim)).reshape(FP, 1)
        # Hidden weight: torch's channel-major flatten (c*L_pool + p) already
        # matches the pooled row order; just zero-pad the contraction dim to FP.
        wh2 = jnp.pad(wh, ((0, 0), (0, FP - flat_dim)))            # (H, FP)
        bh2 = bh.reshape(H, 1)
        # Output weight / bias zero-padded to OUT_ROWS sublane-aligned rows.
        wo2 = jnp.zeros((OUT_ROWS, H), jnp.float32).at[:seq_length_output].set(wo)
        bo2 = jnp.zeros((OUT_ROWS, 1), jnp.float32).at[:seq_length_output, 0].set(bo)
        return dict(wconv=wconv, bcr=bcr, wh=wh2, bh=bh2, wo=wo2, bo=bo2)

    def kernel(x_ref, wconv_ref, bcr_ref, wh_ref, bh_ref, wo_ref, bo_ref, o_ref):
        # x_ref: (TB, LF) -- contiguous rows in HBM.  The NT matmul below puts the
        # batch tile on the lane axis for everything downstream (no separate
        # relayout, no wrapper transpose pass over x).
        conv_all = jnp.dot(wconv_ref[...], x_ref[...].T,
                           preferred_element_type=jnp.float32)     # (pool_size*FP, TB)
        # MaxPool1d: max over the pool_size aligned row-slabs (offsets multiple of 8).
        pooled = conv_all[0:FP, :]
        for j in range(1, pool_size):
            pooled = jnp.maximum(pooled, conv_all[j * FP:(j + 1) * FP, :])
        # Conv bias + ReLU (ReLU(max(s)+b) == max over window of ReLU(s+b)).
        act = jnp.maximum(pooled + bcr_ref[...], 0.0)              # (FP, TB)
        # Hidden Linear: ONE dot with K = filters*L_pool, then ReLU.
        h = jnp.maximum(
            jnp.dot(wh_ref[...], act, preferred_element_type=jnp.float32)
            + bh_ref[...], 0.0)                                    # (H, TB)
        # TODO(synk): Dropout(p=0) is an inference no-op; not implemented.
        out = (jnp.dot(wo_ref[...], h, preferred_element_type=jnp.float32)
               + bo_ref[...])                                      # (OUT_ROWS, TB)
        o_ref[...] = out.astype(o_ref.dtype)

    def _forward(x, prepped):
        B = x.shape[0]
        x = x.astype(jnp.float32).reshape(B, LF)      # free reshape, no HBM copy
        if B < 128:
            B_io = _round_up(B, 8)
            TB = B_io
            if B_io != B:                             # tiny pad only for tiny batches
                x = jnp.pad(x, ((0, B_io - B), (0, 0)))
        else:
            B_io = B                                  # no pad copy for large batches
            # TB multiple of 128, capped at batch_tile, and < B so the grid has
            # >= 2 steps whenever possible (v7x has 2 TensorCores).
            TB = min(batch_tile, max(128, 128 * ((B - 1) // 128)))
        grid = (pl.cdiv(B_io, TB),)

        out_t = pl.pallas_call(
            kernel,
            out_shape=jax.ShapeDtypeStruct((OUT_ROWS, B_io), jnp.float32),
            grid_spec=pltpu.PrefetchScalarGridSpec(
                num_scalar_prefetch=0,
                grid=grid,
                in_specs=[
                    pl.BlockSpec((TB, LF), lambda i: (i, 0)),               # x
                    pl.BlockSpec((pool_size * FP, LF), lambda i: (0, 0)),   # banded conv W
                    pl.BlockSpec((FP, 1), lambda i: (0, 0)),                # conv bias
                    pl.BlockSpec((H, FP), lambda i: (0, 0)),                # hidden W
                    pl.BlockSpec((H, 1), lambda i: (0, 0)),                 # hidden b
                    pl.BlockSpec((OUT_ROWS, H), lambda i: (0, 0)),          # out W
                    pl.BlockSpec((OUT_ROWS, 1), lambda i: (0, 0)),          # out b
                ],
                out_specs=pl.BlockSpec((OUT_ROWS, TB), lambda i: (0, i)),
            ),
            compiler_params=pltpu.CompilerParams(
                dimension_semantics=("parallel",)),
        )(x, prepped["wconv"], prepped["bcr"], prepped["wh"], prepped["bh"],
          prepped["wo"], prepped["bo"])
        # Cheap transpose back to (B, seq_length_output).
        return out_t[:seq_length_output, :B].T

    return jax.jit(_forward), prepare_params, L_pool


def ref_forward(x, params, *, pool_size):
    """Pure-JAX reference matching the PyTorch forward exactly."""
    wc, bc, wh, bh, wo, bo = (params[k] for k in
                              ("conv_w", "conv_b", "hid_w", "hid_b",
                               "out_w", "out_b"))
    xt = jnp.transpose(x, (0, 2, 1))                    # (B, F, L) = NCL
    conv = jax.lax.conv_general_dilated(
        xt, wc, window_strides=(1,), padding="VALID",
        dimension_numbers=("NCH", "OIH", "NCH"))
    conv = jnp.maximum(conv + bc[None, :, None], 0.0)
    B, C, Lc = conv.shape
    Lp = (Lc - pool_size) // pool_size + 1
    pooled = jnp.max(conv[:, :, :Lp * pool_size].reshape(B, C, Lp, pool_size),
                     axis=-1)
    flat = pooled.reshape(B, -1)                        # channel-major flatten
    h = jnp.maximum(flat @ wh.T + bh, 0.0)
    return h @ wo.T + bo


if __name__ == "__main__":
    # Small, deterministic config consistent with the module's forward.
    B = 2
    num_features = 4
    seq_length_input = 16
    kernel_size = 2
    filters = 8
    pool_size = 2
    hidden_units = 32
    seq_length_output = 8

    L_conv = seq_length_input - (kernel_size - 1)
    L_pool = (L_conv - (pool_size - 1) - 1) // pool_size + 1
    flat_dim = filters * L_pool

    key = jax.random.PRNGKey(0)
    ks = jax.random.split(key, 7)

    def uinit(k, shape, fan_in):
        bound = 1.0 / np.sqrt(fan_in)
        return jax.random.uniform(k, shape, jnp.float32, -bound, bound)

    params = {
        "conv_w": uinit(ks[0], (filters, num_features, kernel_size),
                        num_features * kernel_size),
        "conv_b": uinit(ks[1], (filters,), num_features * kernel_size),
        "hid_w": uinit(ks[2], (hidden_units, flat_dim), flat_dim),
        "hid_b": uinit(ks[3], (hidden_units,), flat_dim),
        "out_w": uinit(ks[4], (seq_length_output, hidden_units), hidden_units),
        "out_b": uinit(ks[5], (seq_length_output,), hidden_units),
    }

    x = jax.random.normal(ks[6], (B, seq_length_input, num_features), jnp.float32)

    forward, prepare_params, _ = make_cnn_forward(
        num_features=num_features, filters=filters, kernel_size=kernel_size,
        pool_size=pool_size, seq_length_input=seq_length_input,
        hidden_units=hidden_units, seq_length_output=seq_length_output,
        batch_tile=256)

    prepped = jax.block_until_ready(prepare_params(params))  # one-time weight prep

    out = forward(x, prepped)
    out = jax.block_until_ready(out)

    ref = jax.block_until_ready(ref_forward(x, params, pool_size=pool_size))
    np.testing.assert_allclose(np.asarray(out), np.asarray(ref),
                               rtol=1e-5, atol=2e-5)
    assert out.shape == (B, seq_length_output)

    print("KERNEL_OK")
</pallas_src>

<mosaic_0001>
module attributes {stable_mosaic.version = 11 : i64} {
  func.func @kernel(%arg0: i32, %arg1: memref<8x64xf32, #tpu.memory_space<vmem>>, %arg2: memref<112x64xf32, #tpu.memory_space<vmem>>, %arg3: memref<56x1xf32, #tpu.memory_space<vmem>>, %arg4: memref<32x56xf32, #tpu.memory_space<vmem>>, %arg5: memref<32x1xf32, #tpu.memory_space<vmem>>, %arg6: memref<8x32xf32, #tpu.memory_space<vmem>>, %arg7: memref<8x1xf32, #tpu.memory_space<vmem>>, %arg8: memref<8x8xf32, #tpu.memory_space<vmem>>) attributes {dimension_semantics = [#tpu.dimension_semantics<parallel>], iteration_bounds = array<i64: 1>, scalar_prefetch = 0 : i64, scratch_operands = 0 : i64, tpu.core_type = #tpu.core_type<tc>, window_params = [{transform_indices = @transform_0, window_bounds = array<i64: 8, 64>}, {pipeline_mode = #tpu.pipeline_mode<synchronous>, transform_indices = @transform_1, window_bounds = array<i64: 112, 64>}, {pipeline_mode = #tpu.pipeline_mode<synchronous>, transform_indices = @transform_2, window_bounds = array<i64: 56, 1>}, {pipeline_mode = #tpu.pipeline_mode<synchronous>, transform_indices = @transform_3, window_bounds = array<i64: 32, 56>}, {pipeline_mode = #tpu.pipeline_mode<synchronous>, transform_indices = @transform_4, window_bounds = array<i64: 32, 1>}, {pipeline_mode = #tpu.pipeline_mode<synchronous>, transform_indices = @transform_5, window_bounds = array<i64: 8, 32>}, {pipeline_mode = #tpu.pipeline_mode<synchronous>, transform_indices = @transform_6, window_bounds = array<i64: 8, 1>}, {transform_indices = @transform_7, window_bounds = array<i64: 8, 8>}]} {
    %c0 = arith.constant 0 : index
    %c0_0 = arith.constant 0 : index
    %0 = vector.load %arg2[%c0, %c0_0] : memref<112x64xf32, #tpu.memory_space<vmem>>, vector<112x64xf32>
    %c0_1 = arith.constant 0 : index
    %c0_2 = arith.constant 0 : index
    %1 = vector.load %arg1[%c0_1, %c0_2] : memref<8x64xf32, #tpu.memory_space<vmem>>, vector<8x64xf32>
    %2 = tpu.transpose %1, [1, 0] : vector<8x64xf32> -> vector<64x8xf32>
    %cst = arith.constant dense<0.000000e+00> : vector<112x8xf32>
    %3 = tpu.matmul %0, %2, %cst {dimension_numbers = #tpu.dot_dimension_numbers<[1], [0], [0], [1], [0, 0, 1, 1], [], []>} : vector<112x64xf32>, vector<64x8xf32>, vector<112x8xf32> -> vector<112x8xf32>
    %4 = vector.extract_strided_slice %3 {offsets = [0, 0], sizes = [56, 8], strides = [1, 1]} : vector<112x8xf32> to vector<56x8xf32>
    %5 = vector.extract_strided_slice %3 {offsets = [56, 0], sizes = [56, 8], strides = [1, 1]} : vector<112x8xf32> to vector<56x8xf32>
    %6 = arith.maximumf %4, %5 : vector<56x8xf32>
    %c0_3 = arith.constant 0 : index
    %c0_4 = arith.constant 0 : index
    %7 = vector.load %arg3[%c0_3, %c0_4] : memref<56x1xf32, #tpu.memory_space<vmem>>, vector<56x1xf32>
    %8 = vector.broadcast %7 : vector<56x1xf32> to vector<56x8xf32>
    %9 = arith.addf %6, %8 : vector<56x8xf32>
    %cst_5 = arith.constant 0.000000e+00 : f32
    %10 = vector.broadcast %cst_5 : f32 to vector<56x8xf32>
    %11 = arith.maximumf %9, %10 : vector<56x8xf32>
    %c0_6 = arith.constant 0 : index
    %c0_7 = arith.constant 0 : index
    %12 = vector.load %arg4[%c0_6, %c0_7] : memref<32x56xf32, #tpu.memory_space<vmem>>, vector<32x56xf32>
    %cst_8 = arith.constant dense<0.000000e+00> : vector<32x8xf32>
    %13 = tpu.matmul %12, %11, %cst_8 {dimension_numbers = #tpu.dot_dimension_numbers<[1], [0], [0], [1], [0, 0, 1, 1], [], []>} : vector<32x56xf32>, vector<56x8xf32>, vector<32x8xf32> -> vector<32x8xf32>
    %c0_9 = arith.constant 0 : index
    %c0_10 = arith.constant 0 : index
    %14 = vector.load %arg5[%c0_9, %c0_10] : memref<32x1xf32, #tpu.memory_space<vmem>>, vector<32x1xf32>
    %15 = vector.broadcast %14 : vector<32x1xf32> to vector<32x8xf32>
    %16 = arith.addf %13, %15 : vector<32x8xf32>
    %cst_11 = arith.constant 0.000000e+00 : f32
    %17 = vector.broadcast %cst_11 : f32 to vector<32x8xf32>
    %18 = arith.maximumf %16, %17 : vector<32x8xf32>
    %c0_12 = arith.constant 0 : index
    %c0_13 = arith.constant 0 : index
    %19 = vector.load %arg6[%c0_12, %c0_13] : memref<8x32xf32, #tpu.memory_space<vmem>>, vector<8x32xf32>
    %cst_14 = arith.constant dense<0.000000e+00> : vector<8x8xf32>
    %20 = tpu.matmul %19, %18, %cst_14 {dimension_numbers = #tpu.dot_dimension_numbers<[1], [0], [0], [1], [0, 0, 1, 1], [], []>} : vector<8x32xf32>, vector<32x8xf32>, vector<8x8xf32> -> vector<8x8xf32>
    %c0_15 = arith.constant 0 : index
    %c0_16 = arith.constant 0 : index
    %21 = vector.load %arg7[%c0_15, %c0_16] : memref<8x1xf32, #tpu.memory_space<vmem>>, vector<8x1xf32>
    %22 = vector.broadcast %21 : vector<8x1xf32> to vector<8x8xf32>
    %23 = arith.addf %20, %22 : vector<8x8xf32>
    %c0_17 = arith.constant 0 : index
    %c0_18 = arith.constant 0 : index
    %24 = vector.load %arg8[%c0_17, %c0_18] : memref<8x8xf32, #tpu.memory_space<vmem>>, vector<8x8xf32>
    tpu.vector_store %arg8[%c0_17, %c0_18], %23 {strides = array<i32>} : memref<8x8xf32, #tpu.memory_space<vmem>>, vector<8x8xf32>,
    return
  }
  func.func @transform_0(%arg0: i32) -> (i32, i32) {
    %c0_i32 = arith.constant 0 : i32
    %c0_i32_0 = arith.constant 0 : i32
    return %arg0, %c0_i32 : i32, i32
  }
  func.func @transform_1(%arg0: i32) -> (i32, i32) {
    %c0_i32 = arith.constant 0 : i32
    %c0_i32_0 = arith.constant 0 : i32
    %c0_i32_1 = arith.constant 0 : i32
    return %c0_i32, %c0_i32_0 : i32, i32
  }
  func.func @transform_2(%arg0: i32) -> (i32, i32) {
    %c0_i32 = arith.constant 0 : i32
    %c0_i32_0 = arith.constant 0 : i32
    %c0_i32_1 = arith.constant 0 : i32
    return %c0_i32, %c0_i32_0 : i32, i32
  }
  func.func @transform_3(%arg0: i32) -> (i32, i32) {
    %c0_i32 = arith.constant 0 : i32
    %c0_i32_0 = arith.constant 0 : i32
    %c0_i32_1 = arith.constant 0 : i32
    return %c0_i32, %c0_i32_0 : i32, i32
  }
  func.func @transform_4(%arg0: i32) -> (i32, i32) {
    %c0_i32 = arith.constant 0 : i32
    %c0_i32_0 = arith.constant 0 : i32
    %c0_i32_1 = arith.constant 0 : i32
    return %c0_i32, %c0_i32_0 : i32, i32
  }
  func.func @transform_5(%arg0: i32) -> (i32, i32) {
    %c0_i32 = arith.constant 0 : i32
    %c0_i32_0 = arith.constant 0 : i32
    %c0_i32_1 = arith.constant 0 : i32
    return %c0_i32, %c0_i32_0 : i32, i32
  }
  func.func @transform_6(%arg0: i32) -> (i32, i32) {
    %c0_i32 = arith.constant 0 : i32
    %c0_i32_0 = arith.constant 0 : i32
    %c0_i32_1 = arith.constant 0 : i32
    return %c0_i32, %c0_i32_0 : i32, i32
  }
  func.func @transform_7(%arg0: i32) -> (i32, i32) {
    %c0_i32 = arith.constant 0 : i32
    %c0_i32_0 = arith.constant 0 : i32
    return %c0_i32, %arg0 : i32, i32
  }
}

</mosaic_0001>

<llo_original>
// kernel: _forward.1
$region0: #{_forward.1}
  #allocation0 [shape = 'u32[]', space=smem, size = 0x4, offset = 0x4, fixed_abs, tag = 'smem constant byte address 0x4 - core index']
  #allocation1 [shape = 'u32[144,128]{1,0:T(1,128)}', space=vmem, size = 0x12000, scoped, tag = 'internal scratch']
  %s0 = inlined_call_operand.vmem [shape: f32[8,64], index: 0, kind: input, shape index: {}]
  %s1 = inlined_call_operand.vmem [shape: f32[112,64], index: 1, kind: input, shape index: {}]
  %s2 = inlined_call_operand.vmem [shape: f32[56,1], index: 2, kind: input, shape index: {}]
  %s3 = inlined_call_operand.vmem [shape: f32[32,56], index: 3, kind: input, shape index: {}]
  %s4 = inlined_call_operand.vmem [shape: f32[32,1], index: 4, kind: input, shape index: {}]
  %s5 = inlined_call_operand.vmem [shape: f32[8,32], index: 5, kind: input, shape index: {}]
  %s6 = inlined_call_operand.vmem [shape: f32[8,1], index: 6, kind: input, shape index: {}]
  %s7 = inlined_call_operand.vmem [shape: f32[8,8], index: 7, kind: output, shape index: {}]
  %s8 = sld [smem:[#allocation0]]
  $region38: #{_forward.1} parent=0
    _
  %s10 = ssub.s32 1, %s8
  %s11 = scalar_select 0, %s10, %s8
  // Predicated region
  $region2: #{_forward.1} parent=0 // pred_check
    _
  $region3: #{_forward.1} parent=0 // pred_check_branch
    %13 = sbr.rel (0) target = $region5
  $region4: #{_forward.1} parent=0 // pred_region
    _
  $region5: #{_forward.1} parent=0 // pred_fallthru
    _
  // Predicated region
  $region6: #{_forward.1} parent=0 // pred_check
    _
  $region7: #{_forward.1} parent=0 // pred_check_branch
    %15 = sbr.rel (0) target = $region9
  $region8: #{_forward.1} parent=0 // pred_region
    _
  $region9: #{_forward.1} parent=0 // pred_fallthru
    _
  // Predicated region
  $region10: #{_forward.1} parent=0 // pred_check
    _
  $region11: #{_forward.1} parent=0 // pred_check_branch
    %17 = sbr.rel (0) target = $region13
  $region12: #{_forward.1} parent=0 // pred_region
    _
  $region13: #{_forward.1} parent=0 // pred_fallthru
    _
  // Predicated region
  $region14: #{_forward.1} parent=0 // pred_check
    _
  $region15: #{_forward.1} parent=0 // pred_check_branch
    %19 = sbr.rel (0) target = $region17
  $region16: #{_forward.1} parent=0 // pred_region
    _
  $region17: #{_forward.1} parent=0 // pred_fallthru
    _
  // Predicated region
  $region18: #{_forward.1} parent=0 // pred_check
    _
  $region19: #{_forward.1} parent=0 // pred_check_branch
    %21 = sbr.rel (0) target = $region21
  $region20: #{_forward.1} parent=0 // pred_region
    _
  $region21: #{_forward.1} parent=0 // pred_fallthru
    _
  // Predicated region
  $region22: #{_forward.1} parent=0 // pred_check
    _
  $region23: #{_forward.1} parent=0 // pred_check_branch
    %23 = sbr.rel (0) target = $region25
  $region24: #{_forward.1} parent=0 // pred_region
    _
  $region25: #{_forward.1} parent=0 // pred_fallthru
    _
  // Predicated region
  $region26: #{_forward.1} parent=0 // pred_check
    _
  $region27: #{_forward.1} parent=0 // pred_check_branch
    %25 = sbr.rel (0) target = $region29
  $region28: #{_forward.1} parent=0 // pred_region
    _
  $region29: #{_forward.1} parent=0 // pred_fallthru
    _
  %v26 = vld [vmem:[%s1] sm:$0xff]
  %v27 = vld [vmem:[%s1 + $0x8] sm:$0xff]
  %v28 = vld [vmem:[%s1 + $0x10] sm:$0xff]
  %v29 = vld [vmem:[%s1 + $0x18] sm:$0xff]
  %v30 = vld [vmem:[%s1 + $0x20] sm:$0xff]
  %v31 = vld [vmem:[%s1 + $0x28] sm:$0xff]
  %v32 = vld [vmem:[%s1 + $0x30] sm:$0xff]
  %v33 = vld [vmem:[%s1 + $0x38] sm:$0xff]
  %v34 = vld [vmem:[%s1 + $0x40] sm:$0xff]
  %v35 = vld [vmem:[%s1 + $0x48] sm:$0xff]
  %v36 = vld [vmem:[%s1 + $0x50] sm:$0xff]
  %v37 = vld [vmem:[%s1 + $0x58] sm:$0xff]
  %v38 = vld [vmem:[%s1 + $0x60] sm:$0xff]
  %v39 = vld [vmem:[%s1 + $0x68] sm:$0xff]
  %v40 = vld [vmem:[%s0] sm:$0xff]
  %vm41 = vcmask 523264
  %v43 = vsel %vm41, %v26, 0
  %v46 = vsel %vm41, %v27, 0
  %v49 = vsel %vm41, %v28, 0
  %v52 = vsel %vm41, %v29, 0
  %v55 = vsel %vm41, %v30, 0
  %v58 = vsel %vm41, %v31, 0
  %v61 = vsel %vm41, %v32, 0
  %v64 = vsel %vm41, %v33, 0
  %v67 = vsel %vm41, %v34, 0
  %v70 = vsel %vm41, %v35, 0
  %v73 = vsel %vm41, %v36, 0
  %v76 = vsel %vm41, %v37, 0
  %v79 = vsel %vm41, %v38, 0
  %v82 = vsel %vm41, %v39, 0
  %v85 = vsel %vm41, %v40, 0
  %87 = vmatprep.subr.mxu0 0.0
  %88 = vmatpush1.xpose.msra.mxu0 %v85
  %89 = vmatprep.subr.mxu0 0.0
  %90 = vmatpush1.xpose.msra.mxu0 0.0
  %91 = vmatprep.subr.mxu0 0.0
  %92 = vmatpush1.xpose.msra.mxu0 0.0
  %93 = vmatprep.subr.mxu0 0.0
  %94 = vmatpush1.xpose.msra.mxu0 0.0
  %95 = vmatprep.subr.mxu0 0.0
  %96 = vmatpush1.xpose.msra.mxu0 0.0
  %97 = vmatprep.subr.mxu0 0.0
  %98 = vmatpush1.xpose.msra.mxu0 0.0
  %99 = vmatprep.subr.mxu0 0.0
  %100 = vmatpush1.xpose.msra.mxu0 0.0
  %101 = vmatprep.subr.mxu0 0.0
  %102 = vmatpush1.xpose.msra.mxu0 0.0
  %103 = vmatprep.subr.mxu0 0.0
  %104 = vmatpush1.xpose.msra.mxu0 0.0
  %105 = vmatprep.subr.mxu0 0.0
  %106 = vmatpush1.xpose.msra.mxu0 0.0
  %107 = vmatprep.subr.mxu0 0.0
  %108 = vmatpush1.xpose.msra.mxu0 0.0
  %109 = vmatprep.subr.mxu0 0.0
  %110 = vmatpush1.xpose.msra.mxu0 0.0
  %111 = vmatprep.subr.mxu0 0.0
  %112 = vmatpush1.xpose.msra.mxu0 0.0
  %113 = vmatprep.subr.mxu0 0.0
  %114 = vmatpush1.xpose.msra.mxu0 0.0
  %115 = vmatprep.subr.mxu0 0.0
  %116 = vmatpush1.xpose.msra.mxu0 0.0
  %117 = vmatprep.subr.mxu0 0.0
  %118 = vmatpush1.xpose.msra.mxu0 0.0
  %119 = vmatprep.subr.mxu0 0.0
  %120 = vmatpush1.xpose.msra.mxu0 0.0
  %121 = vmatprep.subr.mxu0 0.0
  %122 = vmatpush1.xpose.msra.mxu0 0.0
  %123 = vmatprep.subr.mxu0 0.0
  %124 = vmatpush1.xpose.msra.mxu0 0.0
  %125 = vmatprep.subr.mxu0 0.0
  %126 = vmatpush1.xpose.msra.mxu0 0.0
  %127 = vmatprep.subr.mxu0 0.0
  %128 = vmatpush1.xpose.msra.mxu0 0.0
  %129 = vmatprep.subr.mxu0 0.0
  %130 = vmatpush1.xpose.msra.mxu0 0.0
  %131 = vmatprep.subr.mxu0 0.0
  %132 = vmatpush1.xpose.msra.mxu0 0.0
  %133 = vmatprep.subr.mxu0 0.0
  %134 = vmatpush1.xpose.msra.mxu0 0.0
  %135 = vmatprep.subr.mxu0 0.0
  %136 = vmatpush1.xpose.msra.mxu0 0.0
  %137 = vmatprep.subr.mxu0 0.0
  %138 = vmatpush1.xpose.msra.mxu0 0.0
  %139 = vmatprep.subr.mxu0 0.0
  %140 = vmatpush1.xpose.msra.mxu0 0.0
  %141 = vmatprep.subr.mxu0 0.0
  %142 = vmatpush1.xpose.msra.mxu0 0.0
  %143 = vmatprep.subr.mxu0 0.0
  %144 = vmatpush1.xpose.msra.mxu0 0.0
  %145 = vmatprep.subr.mxu0 0.0
  %146 = vmatpush1.xpose.msra.mxu0 0.0
  %147 = vmatprep.subr.mxu0 0.0
  %148 = vmatpush1.xpose.msra.mxu0 0.0
  %149 = vmatprep.subr.mxu0 0.0
  %150 = vmatpush1.xpose.msra.mxu0 0.0
  %151 = vmatprep.mubr.f32.mxu0 0.0
  %152 = vmatmul.mubr.f32.gmra.mrb[0].mxu0 %v43
  %v153 = vpop.f32.mrb[0].mxu0
  %v154 = vadd.f32 0.0, %v153
  %v155 = vpop.f32.mrb[0].mxu0
  %156 = vmatprep.mubr.f32.mxu0 0.0
  %157 = vmatmul.mubr.f32.gmra.mrb[0].mxu0 %v46
  %v158 = vpop.f32.mrb[0].mxu0
  %v159 = vadd.f32 0.0, %v158
  %v160 = vpop.f32.mrb[0].mxu0
  %161 = vmatprep.mubr.f32.mxu0 0.0
  %162 = vmatmul.mubr.f32.gmra.mrb[0].mxu0 %v49
  %v163 = vpop.f32.mrb[0].mxu0
  %v164 = vadd.f32 0.0, %v163
  %v165 = vpop.f32.mrb[0].mxu0
  %166 = vmatprep.mubr.f32.mxu0 0.0
  %167 = vmatmul.mubr.f32.gmra.mrb[0].mxu0 %v52
  %v168 = vpop.f32.mrb[0].mxu0
  %v169 = vadd.f32 0.0, %v168
  %v170 = vpop.f32.mrb[0].mxu0
  %171 = vmatprep.mubr.f32.mxu0 0.0
  %172 = vmatmul.mubr.f32.gmra.mrb[0].mxu0 %v55
  %v173 = vpop.f32.mrb[0].mxu0
  %v174 = vadd.f32 0.0, %v173
  %v175 = vpop.f32.mrb[0].mxu0
  %176 = vmatprep.mubr.f32.mxu0 0.0
  %177 = vmatmul.mubr.f32.gmra.mrb[0].mxu0 %v58
  %v178 = vpop.f32.mrb[0].mxu0
  %v179 = vadd.f32 0.0, %v178
  %v180 = vpop.f32.mrb[0].mxu0
  %181 = vmatprep.mubr.f32.mxu0 0.0
  %182 = vmatmul.mubr.f32.gmra.mrb[0].mxu0 %v61
  %v183 = vpop.f32.mrb[0].mxu0
  %v184 = vadd.f32 0.0, %v183
  %v185 = vpop.f32.mrb[0].mxu0
  %186 = vmatprep.mubr.f32.mxu0 0.0
  %187 = vmatmul.mubr.f32.gmra.mrb[0].mxu0 %v64
  %v188 = vpop.f32.mrb[0].mxu0
  %v189 = vadd.f32 0.0, %v188
  %v190 = vpop.f32.mrb[0].mxu0
  %191 = vmatprep.mubr.f32.mxu0 0.0
  %192 = vmatmul.mubr.f32.gmra.mrb[0].mxu0 %v67
  %v193 = vpop.f32.mrb[0].mxu0
  %v194 = vadd.f32 0.0, %v193
  %v195 = vpop.f32.mrb[0].mxu0
  %196 = vmatprep.mubr.f32.mxu0 0.0
  %197 = vmatmul.mubr.f32.gmra.mrb[0].mxu0 %v70
  %v198 = vpop.f32.mrb[0].mxu0
  %v199 = vadd.f32 0.0, %v198
  %v200 = vpop.f32.mrb[0].mxu0
  %201 = vmatprep.mubr.f32.mxu0 0.0
  %202 = vmatmul.mubr.f32.gmra.mrb[0].mxu0 %v73
  %v203 = vpop.f32.mrb[0].mxu0
  %v204 = vadd.f32 0.0, %v203
  %v205 = vpop.f32.mrb[0].mxu0
  %206 = vmatprep.mubr.f32.mxu0 0.0
  %207 = vmatmul.mubr.f32.gmra.mrb[0].mxu0 %v76
  %v208 = vpop.f32.mrb[0].mxu0
  %v209 = vadd.f32 0.0, %v208
  %v210 = vpop.f32.mrb[0].mxu0
  %211 = vmatprep.mubr.f32.mxu0 0.0
  %212 = vmatmul.mubr.f32.gmra.mrb[0].mxu0 %v79
  %v213 = vpop.f32.mrb[0].mxu0
  %v214 = vadd.f32 0.0, %v213
  %v215 = vpop.f32.mrb[0].mxu0
  %216 = vmatprep.mubr.f32.mxu0 0.0
  %217 = vmatmul.mubr.f32.gmra.mrb[0].mxu0 %v82
  %v218 = vpop.f32.mrb[0].mxu0
  %v219 = vadd.f32 0.0, %v218
  %v220 = vpop.f32.mrb[0].mxu0
  %221 = vdwg.mxu0
  %v222 = vmax.f32 %v154, %v189
  %v223 = vmax.f32 %v159, %v194
  %v224 = vmax.f32 %v164, %v199
  %v225 = vmax.f32 %v169, %v204
  %v226 = vmax.f32 %v174, %v209
  %v227 = vmax.f32 %v179, %v214
  %v228 = vmax.f32 %v184, %v219
  %v229 = vld [vmem:[%s2] sm:$0xff]
  %v230 = vld [vmem:[%s2 + $0x8] sm:$0xff]
  %v231 = vld [vmem:[%s2 + $0x10] sm:$0xff]
  %v232 = vld [vmem:[%s2 + $0x18] sm:$0xff]
  %v233 = vld [vmem:[%s2 + $0x20] sm:$0xff]
  %v234 = vld [vmem:[%s2 + $0x28] sm:$0xff]
  %v235 = vld [vmem:[%s2 + $0x30] sm:$0xff]
  %237 = vset.pattern.permute.xlu0 0
  %238 = vperm.xlu0 %237, %v229
  %v239 = vpop.permute.xlu0 %238
  %242 = vset.pattern.permute.xlu0 0
  %243 = vperm.xlu0 %242, %v230
  %v244 = vpop.permute.xlu0 %243
  %247 = vset.pattern.permute.xlu0 0
  %248 = vperm.xlu0 %247, %v231
  %v249 = vpop.permute.xlu0 %248
  %252 = vset.pattern.permute.xlu0 0
  %253 = vperm.xlu0 %252, %v232
  %v254 = vpop.permute.xlu0 %253
  %257 = vset.pattern.permute.xlu0 0
  %258 = vperm.xlu0 %257, %v233
  %v259 = vpop.permute.xlu0 %258
  %262 = vset.pattern.permute.xlu0 0
  %263 = vperm.xlu0 %262, %v234
  %v264 = vpop.permute.xlu0 %263
  %267 = vset.pattern.permute.xlu0 0
  %268 = vperm.xlu0 %267, %v235
  %v269 = vpop.permute.xlu0 %268
  %v271 = vadd.f32 %v222, %v239
  %v272 = vadd.f32 %v223, %v244
  %v273 = vadd.f32 %v224, %v249
  %v274 = vadd.f32 %v225, %v254
  %v275 = vadd.f32 %v226, %v259
  %v276 = vadd.f32 %v227, %v264
  %v277 = vadd.f32 %v228, %v269
  %v278 = vmax.f32 %v271, 0.0
  %v279 = vmax.f32 %v272, 0.0
  %v280 = vmax.f32 %v273, 0.0
  %v281 = vmax.f32 %v274, 0.0
  %v282 = vmax.f32 %v275, 0.0
  %v283 = vmax.f32 %v276, 0.0
  %v284 = vmax.f32 %v277, 0.0
  %v285 = vld [vmem:[%s3] sm:$0xff]
  %v286 = vld [vmem:[%s3 + $0x8] sm:$0xff]
  %v287 = vld [vmem:[%s3 + $0x10] sm:$0xff]
  %v288 = vld [vmem:[%s3 + $0x18] sm:$0xff]
  %v289 = vld [vmem:[%s4] sm:$0xff]
  %v290 = vld [vmem:[%s4 + $0x8] sm:$0xff]
  %v291 = vld [vmem:[%s4 + $0x10] sm:$0xff]
  %v292 = vld [vmem:[%s4 + $0x18] sm:$0xff]
  %294 = vset.pattern.permute.xlu0 0
  %295 = vperm.xlu0 %294, %v289
  %v296 = vpop.permute.xlu0 %295
  %299 = vset.pattern.permute.xlu0 0
  %300 = vperm.xlu0 %299, %v290
  %v301 = vpop.permute.xlu0 %300
  %304 = vset.pattern.permute.xlu0 0
  %305 = vperm.xlu0 %304, %v291
  %v306 = vpop.permute.xlu0 %305
  %309 = vset.pattern.permute.xlu0 0
  %310 = vperm.xlu0 %309, %v292
  %v311 = vpop.permute.xlu0 %310
  %vm313 = vcmask 457728
  %v315 = vsel %vm313, %v285, 0
  %v318 = vsel %vm313, %v286, 0
  %v321 = vsel %vm313, %v287, 0
  %v324 = vsel %vm313, %v288, 0
  %326 = vmatprep.subr.mxu0 0.0
  %327 = vmatpush1.msra.mxu0 %v278
  %328 = vmatprep.subr.mxu0 0.0
  %329 = vmatpush1.msra.mxu0 %v279
  %330 = vmatprep.subr.mxu0 0.0
  %331 = vmatpush1.msra.mxu0 %v280
  %332 = vmatprep.subr.mxu0 0.0
  %333 = vmatpush1.msra.mxu0 %v281
  %334 = vmatprep.subr.mxu0 0.0
  %335 = vmatpush1.msra.mxu0 %v282
  %336 = vmatprep.subr.mxu0 0.0
  %337 = vmatpush1.msra.mxu0 %v283
  %338 = vmatprep.subr.mxu0 0.0
  %339 = vmatpush1.msra.mxu0 %v284
  %340 = vmatprep.subr.mxu0 0.0
  %341 = vmatpush1.msra.mxu0 0.0
  %342 = vmatprep.subr.mxu0 0.0
  %343 = vmatpush1.msra.mxu0 0.0
  %344 = vmatprep.subr.mxu0 0.0
  %345 = vmatpush1.msra.mxu0 0.0
  %346 = vmatprep.subr.mxu0 0.0
  %347 = vmatpush1.msra.mxu0 0.0
  %348 = vmatprep.subr.mxu0 0.0
  %349 = vmatpush1.msra.mxu0 0.0
  %350 = vmatprep.subr.mxu0 0.0
  %351 = vmatpush1.msra.mxu0 0.0
  %352 = vmatprep.subr.mxu0 0.0
  %353 = vmatpush1.msra.mxu0 0.0
  %354 = vmatprep.subr.mxu0 0.0
  %355 = vmatpush1.msra.mxu0 0.0
  %356 = vmatprep.subr.mxu0 0.0
  %357 = vmatpush1.msra.mxu0 0.0
  %358 = vmatprep.subr.mxu0 0.0
  %359 = vmatpush1.msra.mxu0 0.0
  %360 = vmatprep.subr.mxu0 0.0
  %361 = vmatpush1.msra.mxu0 0.0
  %362 = vmatprep.subr.mxu0 0.0
  %363 = vmatpush1.msra.mxu0 0.0
  %364 = vmatprep.subr.mxu0 0.0
  %365 = vmatpush1.msra.mxu0 0.0
  %366 = vmatprep.subr.mxu0 0.0
  %367 = vmatpush1.msra.mxu0 0.0
  %368 = vmatprep.subr.mxu0 0.0
  %369 = vmatpush1.msra.mxu0 0.0
  %370 = vmatprep.subr.mxu0 0.0
  %371 = vmatpush1.msra.mxu0 0.0
  %372 = vmatprep.subr.mxu0 0.0
  %373 = vmatpush1.msra.mxu0 0.0
  %374 = vmatprep.subr.mxu0 0.0
  %375 = vmatpush1.msra.mxu0 0.0
  %376 = vmatprep.subr.mxu0 0.0
  %377 = vmatpush1.msra.mxu0 0.0
  %378 = vmatprep.subr.mxu0 0.0
  %379 = vmatpush1.msra.mxu0 0.0
  %380 = vmatprep.subr.mxu0 0.0
  %381 = vmatpush1.msra.mxu0 0.0
  %382 = vmatprep.subr.mxu0 0.0
  %383 = vmatpush1.msra.mxu0 0.0
  %384 = vmatprep.subr.mxu0 0.0
  %385 = vmatpush1.msra.mxu0 0.0
  %386 = vmatprep.subr.mxu0 0.0
  %387 = vmatpush1.msra.mxu0 0.0
  %388 = vmatprep.subr.mxu0 0.0
  %389 = vmatpush1.msra.mxu0 0.0
  %390 = vmatprep.mubr.f32.mxu0 0.0
  %391 = vmatmul.mubr.f32.gmra.mrb[0].mxu0 %v315
  %v392 = vpop.f32.mrb[0].mxu0
  %v393 = vadd.f32 %v296, %v392
  %v394 = vpop.f32.mrb[0].mxu0
  %395 = vmatprep.mubr.f32.mxu0 0.0
  %396 = vmatmul.mubr.f32.gmra.mrb[0].mxu0 %v318
  %v397 = vpop.f32.mrb[0].mxu0
  %v398 = vadd.f32 %v301, %v397
  %v399 = vpop.f32.mrb[0].mxu0
  %400 = vmatprep.mubr.f32.mxu0 0.0
  %401 = vmatmul.mubr.f32.gmra.mrb[0].mxu0 %v321
  %v402 = vpop.f32.mrb[0].mxu0
  %v403 = vadd.f32 %v306, %v402
  %v404 = vpop.f32.mrb[0].mxu0
  %405 = vmatprep.mubr.f32.mxu0 0.0
  %406 = vmatmul.mubr.f32.gmra.mrb[0].mxu0 %v324
  %v407 = vpop.f32.mrb[0].mxu0
  %v408 = vadd.f32 %v311, %v407
  %v409 = vpop.f32.mrb[0].mxu0
  %410 = vdwg.mxu0
  %v411 = vmax.f32 %v393, 0.0
  %v412 = vmax.f32 %v398, 0.0
  %v413 = vmax.f32 %v403, 0.0
  %v414 = vmax.f32 %v408, 0.0
  %v415 = vld [vmem:[%s5] sm:$0xff]
  %v416 = vld [vmem:[%s6] sm:$0xff]
  %418 = vset.pattern.permute.xlu0 0
  %419 = vperm.xlu0 %418, %v416
  %v420 = vpop.permute.xlu0 %419
  %vm422 = vcmask 261120
  %v424 = vsel %vm422, %v415, 0
  %426 = vmatprep.subr.mxu0 0.0
  %427 = vmatpush1.msra.mxu0 %v411
  %428 = vmatprep.subr.mxu0 0.0
  %429 = vmatpush1.msra.mxu0 %v412
  %430 = vmatprep.subr.mxu0 0.0
  %431 = vmatpush1.msra.mxu0 %v413
  %432 = vmatprep.subr.mxu0 0.0
  %433 = vmatpush1.msra.mxu0 %v414
  %434 = vmatprep.subr.mxu0 0.0
  %435 = vmatpush1.msra.mxu0 0.0
  %436 = vmatprep.subr.mxu0 0.0
  %437 = vmatpush1.msra.mxu0 0.0
  %438 = vmatprep.subr.mxu0 0.0
  %439 = vmatpush1.msra.mxu0 0.0
  %440 = vmatprep.subr.mxu0 0.0
  %441 = vmatpush1.msra.mxu0 0.0
  %442 = vmatprep.subr.mxu0 0.0
  %443 = vmatpush1.msra.mxu0 0.0
  %444 = vmatprep.subr.mxu0 0.0
  %445 = vmatpush1.msra.mxu0 0.0
  %446 = vmatprep.subr.mxu0 0.0
  %447 = vmatpush1.msra.mxu0 0.0
  %448 = vmatprep.subr.mxu0 0.0
  %449 = vmatpush1.msra.mxu0 0.0
  %450 = vmatprep.subr.mxu0 0.0
  %451 = vmatpush1.msra.mxu0 0.0
  %452 = vmatprep.subr.mxu0 0.0
  %453 = vmatpush1.msra.mxu0 0.0
  %454 = vmatprep.subr.mxu0 0.0
  %455 = vmatpush1.msra.mxu0 0.0
  %456 = vmatprep.subr.mxu0 0.0
  %457 = vmatpush1.msra.mxu0 0.0
  %458 = vmatprep.subr.mxu0 0.0
  %459 = vmatpush1.msra.mxu0 0.0
  %460 = vmatprep.subr.mxu0 0.0
  %461 = vmatpush1.msra.mxu0 0.0
  %462 = vmatprep.subr.mxu0 0.0
  %463 = vmatpush1.msra.mxu0 0.0
  %464 = vmatprep.subr.mxu0 0.0
  %465 = vmatpush1.msra.mxu0 0.0
  %466 = vmatprep.subr.mxu0 0.0
  %467 = vmatpush1.msra.mxu0 0.0
  %468 = vmatprep.subr.mxu0 0.0
  %469 = vmatpush1.msra.mxu0 0.0
  %470 = vmatprep.subr.mxu0 0.0
  %471 = vmatpush1.msra.mxu0 0.0
  %472 = vmatprep.subr.mxu0 0.0
  %473 = vmatpush1.msra.mxu0 0.0
  %474 = vmatprep.subr.mxu0 0.0
  %475 = vmatpush1.msra.mxu0 0.0
  %476 = vmatprep.subr.mxu0 0.0
  %477 = vmatpush1.msra.mxu0 0.0
  %478 = vmatprep.subr.mxu0 0.0
  %479 = vmatpush1.msra.mxu0 0.0
  %480 = vmatprep.subr.mxu0 0.0
  %481 = vmatpush1.msra.mxu0 0.0
  %482 = vmatprep.subr.mxu0 0.0
  %483 = vmatpush1.msra.mxu0 0.0
  %484 = vmatprep.subr.mxu0 0.0
  %485 = vmatpush1.msra.mxu0 0.0
  %486 = vmatprep.subr.mxu0 0.0
  %487 = vmatpush1.msra.mxu0 0.0
  %488 = vmatprep.subr.mxu0 0.0
  %489 = vmatpush1.msra.mxu0 0.0
  %490 = vmatprep.mubr.f32.mxu0 0.0
  %491 = vmatmul.mubr.f32.gmra.mrb[0].mxu0 %v424
  %v492 = vpop.f32.mrb[0].mxu0
  %v493 = vadd.f32 %v420, %v492
  %v494 = vpop.f32.mrb[0].mxu0
  %495 = vdwg.mxu0
  %vm496 = vcmask 64512
  %497 = vst.msk [vmem:[%s7] sm:$0xff] %vm496, %v493
  // Predicated region
  $region30: #{_forward.1} parent=0 // pred_check
    _
  $region31: #{_forward.1} parent=0 // pred_check_branch
    %499 = sbr.rel (0) target = $region33
  $region32: #{_forward.1} parent=0 // pred_region
    _
  $region33: #{_forward.1} parent=0 // pred_fallthru
    _
  // Predicated region
  $region34: #{_forward.1} parent=0 // pred_check
    _
  $region35: #{_forward.1} parent=0 // pred_check_branch
    %501 = sbr.rel (0) target = $region37
  $region36: #{_forward.1} parent=0 // pred_region
    _
  $region37: #{_forward.1} parent=0 // pred_fallthru
    _

</llo_original>
